<compile_context>
chip_gen: v7x
topology: tpu7x:2x2x1
jax: 0.10.0
libtpu: 0.0.40
codegen_flags: <defaults>
</compile_context>

<pallas_src>
import functools

import jax
import jax.numpy as jnp
from jax.experimental import pallas as pl
from jax.experimental.pallas import tpu as pltpu

HIDDEN = 128
OUT = 2


# ---------------------------------------------------------------------------
# Kernel
# ---------------------------------------------------------------------------
def adv_net_kernel(x_ref, w1_ref, b1_ref, w2_ref, b2_ref, o_ref):
    # layer1: (TB, F)bf16 @ (F, 128)bf16 -> f32 accumulation on the MXU.
    x = x_ref[...].astype(jnp.bfloat16)
    h = jnp.dot(x, w1_ref[...], preferred_element_type=jnp.float32)
    # bias + ReLU epilogue in f32 (v5e VPU has no bf16 elementwise).
    h = jnp.maximum(h + b1_ref[...], 0.0)
    # dropout1: identity in eval mode (nn.Dropout inference semantics).
    # layer2: tiny (TB, 128) @ (128, 2) kept fully in f32 for parity.
    out = jnp.dot(h, w2_ref[...], preferred_element_type=jnp.float32)
    o_ref[...] = (out + b2_ref[...]).astype(o_ref.dtype)


# ---------------------------------------------------------------------------
# Tiling / chip heuristics (pure Python, evaluated at trace/compile time)
# ---------------------------------------------------------------------------
def _chip_info():
    """Returns (tensorcores_per_chip, vmem_budget_bytes, vmem_limit_bytes).

    Conservative defaults (safe on every generation) if detection fails.
    """
    cores, budget, limit = 1, 24 << 20, 32 << 20
    try:
        kind = jax.devices()[0].device_kind.lower()
    except Exception:  # pragma: no cover - detection is best-effort only
        return cores, budget, limit
    if "v7" in kind:
        # v7x: 2 TensorCores/chip, only 64 MiB physical VMEM per core.
        cores = 2
    elif "v5" in kind or "v6" in kind:
        # 128 MiB physical VMEM -> bigger tiles keep the DMA pipeline full.
        budget, limit = 48 << 20, 64 << 20
    return cores, budget, limit


def _round_up(x, m):
    return ((x + m - 1) // m) * m


def _pick_block_b(B, F, cores, budget):
    # Resident weights/biases (double-buffered by the pipeline even though the
    # index map is constant).
    fixed = 2 * (F * HIDDEN * 2 + HIDDEN * 4 + HIDDEN * OUT * 4 + OUT * 4)
    # Per-row cost: double-buffered f32 x tile + in-kernel bf16 x copy +
    # f32 hidden activation + double-buffered f32 (B, 2) output tile.
    per_row = 2 * F * 4 + F * 2 + HIDDEN * 4 + 2 * OUT * 4

    def fits(bb):
        return fixed + bb * per_row <= budget

    def shrink(bb):
        while bb > 8 and not fits(bb):
            bb = _round_up(bb // 2, 8)
        return max(bb, 8)

    if cores >= 2 and B >= 256:
        # v7x: at least 2 grid steps so both TensorCores get a share of the
        # batch under dimension_semantics=("parallel",).
        return shrink(_round_up(pl.cdiv(B, 2), 8))
    if B <= 512 and fits(B):
        # Single grid step: full-extent block, zero per-step overhead.
        return B
    return shrink(1024)


# ---------------------------------------------------------------------------
# Wrapper
# ---------------------------------------------------------------------------
def prepare_params(w1, b1, w2, b2):
    """One-time parameter prep (hoists the W1 -> bf16 cast out of the call path)."""
    return (jnp.asarray(w1, jnp.bfloat16),
            jnp.asarray(b1, jnp.float32).reshape(1, HIDDEN),
            jnp.asarray(w2, jnp.float32),
            jnp.asarray(b2, jnp.float32).reshape(1, OUT))


@functools.partial(jax.jit, static_argnames=("block_b", "vmem_limit"))
def _adv_forward(x, w1, b1, w2, b2, *, block_b, vmem_limit):
    B, F = x.shape
    # bf16 weights for the MXU (no-op if the caller already prepared them).
    w1b = w1 if w1.dtype == jnp.bfloat16 else w1.astype(jnp.bfloat16)
    b1r = b1.reshape(1, HIDDEN).astype(jnp.float32)
    w2r = w2.astype(jnp.float32)
    b2r = b2.reshape(1, OUT).astype(jnp.float32)

    grid = (pl.cdiv(B, block_b),)
    return pl.pallas_call(
        adv_net_kernel,
        out_shape=jax.ShapeDtypeStruct((B, OUT), x.dtype),
        grid_spec=pltpu.PrefetchScalarGridSpec(
            num_scalar_prefetch=0,
            grid=grid,
            in_specs=[
                pl.BlockSpec((block_b, F), lambda i: (i, 0)),      # x tile
                pl.BlockSpec((F, HIDDEN), lambda i: (0, 0)),       # W1 (resident)
                pl.BlockSpec((1, HIDDEN), lambda i: (0, 0)),       # b1
                pl.BlockSpec((HIDDEN, OUT), lambda i: (0, 0)),     # W2
                pl.BlockSpec((1, OUT), lambda i: (0, 0)),          # b2
            ],
            out_specs=pl.BlockSpec((block_b, OUT), lambda i: (i, 0)),
        ),
        compiler_params=pltpu.CompilerParams(
            dimension_semantics=("parallel",),   # batch shards across TCs on v7x
            vmem_limit_bytes=vmem_limit,
        ),
    )(x, w1b, b1r, w2r, b2r)


def adversarial_network(x, w1, b1, w2, b2, *, block_b=None):
    B, F = x.shape
    assert w1.shape == (F, HIDDEN)
    assert w2.shape == (HIDDEN, OUT)
    cores, budget, limit = _chip_info()
    if block_b is None:
        block_b = _pick_block_b(B, F, cores, budget)
    return _adv_forward(x, w1, b1, w2, b2, block_b=block_b, vmem_limit=limit)


# ---------------------------------------------------------------------------
# Init + reference
# ---------------------------------------------------------------------------
def init_params(key, in_feature):
    # PyTorch-style uniform(-1/sqrt(fan_in), 1/sqrt(fan_in)) init.
    k1, k2, k3, k4 = jax.random.split(key, 4)
    bound1 = 1.0 / jnp.sqrt(in_feature)
    bound2 = 1.0 / jnp.sqrt(HIDDEN)
    # Weights stored transposed (in, out) so the kernel computes x @ W.
    w1 = jax.random.uniform(k1, (in_feature, HIDDEN), jnp.float32, -bound1, bound1)
    b1 = jax.random.uniform(k2, (HIDDEN,), jnp.float32, -bound1, bound1)
    w2 = jax.random.uniform(k3, (HIDDEN, OUT), jnp.float32, -bound2, bound2)
    b2 = jax.random.uniform(k4, (OUT,), jnp.float32, -bound2, bound2)
    return w1, b1, w2, b2


def reference(x, w1, b1, w2, b2):
    h = jnp.maximum(x @ w1 + b1, 0.0)
    return h @ w2 + b2


# TODO(synk): training-mode Dropout(p=0.5) masking/scaling is not implemented
# (forward matches nn.Module eval semantics only).

if __name__ == "__main__":
    key = jax.random.PRNGKey(0)
    kx, kp = jax.random.split(key)

    batch, in_feature = 8, 32
    x = jax.random.normal(kx, (batch, in_feature), jnp.float32)
    w1, b1, w2, b2 = init_params(kp, in_feature)

    # Path 1: f32 params, auto block selection (single grid step here).
    out = jax.block_until_ready(adversarial_network(x, w1, b1, w2, b2))
    ref = reference(x, w1, b1, w2, b2)
    assert out.shape == (batch, OUT)
    # bf16 MXU operands on layer1 with f32 accumulation -> loosened tolerance.
    assert jnp.allclose(out, ref, atol=5e-2, rtol=5e-2), "mismatch vs reference"

    # Path 2: pre-prepared (bf16 W1) params + multi-step grid with a ragged
    # last tile (B=20, block_b=8) to exercise masked writeback.
    w1p, b1p, w2p, b2p = prepare_params(w1, b1, w2, b2)
    x2 = jax.random.normal(jax.random.PRNGKey(1), (20, in_feature), jnp.float32)
    out2 = jax.block_until_ready(
        adversarial_network(x2, w1p, b1p, w2p, b2p, block_b=8))
    ref2 = reference(x2, w1, b1, w2, b2)
    assert out2.shape == (20, OUT)
    assert jnp.allclose(out2, ref2, atol=5e-2, rtol=5e-2), "mismatch (ragged tile)"

    print("KERNEL_OK")
</pallas_src>

<mosaic_0001>
module attributes {stable_mosaic.version = 11 : i64} {
  func.func @adv_net_kernel(%arg0: i32, %arg1: memref<8x32xf32, #tpu.memory_space<vmem>>, %arg2: memref<32x128xbf16, #tpu.memory_space<vmem>>, %arg3: memref<1x128xf32, #tpu.memory_space<vmem>>, %arg4: memref<128x2xf32, #tpu.memory_space<vmem>>, %arg5: memref<1x2xf32, #tpu.memory_space<vmem>>, %arg6: memref<8x2xf32, #tpu.memory_space<vmem>>) attributes {dimension_semantics = [#tpu.dimension_semantics<parallel>], iteration_bounds = array<i64: 1>, scalar_prefetch = 0 : i64, scratch_operands = 0 : i64, tpu.core_type = #tpu.core_type<tc>, window_params = [{transform_indices = @transform_0, window_bounds = array<i64: 8, 32>}, {pipeline_mode = #tpu.pipeline_mode<synchronous>, transform_indices = @transform_1, window_bounds = array<i64: 32, 128>}, {pipeline_mode = #tpu.pipeline_mode<synchronous>, transform_indices = @transform_2, window_bounds = array<i64: 1, 128>}, {pipeline_mode = #tpu.pipeline_mode<synchronous>, transform_indices = @transform_3, window_bounds = array<i64: 128, 2>}, {pipeline_mode = #tpu.pipeline_mode<synchronous>, transform_indices = @transform_4, window_bounds = array<i64: 1, 2>}, {transform_indices = @transform_5, window_bounds = array<i64: 8, 2>}]} {
    %c0 = arith.constant 0 : index
    %c0_0 = arith.constant 0 : index
    %0 = vector.load %arg1[%c0, %c0_0] : memref<8x32xf32, #tpu.memory_space<vmem>>, vector<8x32xf32>
    %1 = arith.truncf %0 : vector<8x32xf32> to vector<8x32xbf16>
    %c0_1 = arith.constant 0 : index
    %c0_2 = arith.constant 0 : index
    %2 = vector.load %arg2[%c0_1, %c0_2] : memref<32x128xbf16, #tpu.memory_space<vmem>>, vector<32x128xbf16>
    %cst = arith.constant dense<0.000000e+00> : vector<8x128xf32>
    %3 = tpu.matmul %1, %2, %cst {dimension_numbers = #tpu.dot_dimension_numbers<[1], [0], [0], [1], [0, 0, 1, 1], [], []>} : vector<8x32xbf16>, vector<32x128xbf16>, vector<8x128xf32> -> vector<8x128xf32>
    %c0_3 = arith.constant 0 : index
    %c0_4 = arith.constant 0 : index
    %4 = vector.load %arg3[%c0_3, %c0_4] : memref<1x128xf32, #tpu.memory_space<vmem>>, vector<1x128xf32>
    %5 = vector.broadcast %4 : vector<1x128xf32> to vector<8x128xf32>
    %6 = arith.addf %3, %5 : vector<8x128xf32>
    %cst_5 = arith.constant 0.000000e+00 : f32
    %7 = vector.broadcast %cst_5 : f32 to vector<8x128xf32>
    %8 = arith.maximumf %6, %7 : vector<8x128xf32>
    %c0_6 = arith.constant 0 : index
    %c0_7 = arith.constant 0 : index
    %9 = vector.load %arg4[%c0_6, %c0_7] : memref<128x2xf32, #tpu.memory_space<vmem>>, vector<128x2xf32>
    %cst_8 = arith.constant dense<0.000000e+00> : vector<8x2xf32>
    %10 = tpu.matmul %8, %9, %cst_8 {dimension_numbers = #tpu.dot_dimension_numbers<[1], [0], [0], [1], [0, 0, 1, 1], [], []>} : vector<8x128xf32>, vector<128x2xf32>, vector<8x2xf32> -> vector<8x2xf32>
    %c0_9 = arith.constant 0 : index
    %c0_10 = arith.constant 0 : index
    %11 = vector.load %arg5[%c0_9, %c0_10] : memref<1x2xf32, #tpu.memory_space<vmem>>, vector<1x2xf32>
    %12 = vector.broadcast %11 : vector<1x2xf32> to vector<8x2xf32>
    %13 = arith.addf %10, %12 : vector<8x2xf32>
    %c0_11 = arith.constant 0 : index
    %c0_12 = arith.constant 0 : index
    %14 = vector.load %arg6[%c0_11, %c0_12] : memref<8x2xf32, #tpu.memory_space<vmem>>, vector<8x2xf32>
    tpu.vector_store %arg6[%c0_11, %c0_12], %13 {strides = array<i32>} : memref<8x2xf32, #tpu.memory_space<vmem>>, vector<8x2xf32>,
    return
  }
  func.func @transform_0(%arg0: i32) -> (i32, i32) {
    %c0_i32 = arith.constant 0 : i32
    %c0_i32_0 = arith.constant 0 : i32
    return %arg0, %c0_i32 : i32, i32
  }
  func.func @transform_1(%arg0: i32) -> (i32, i32) {
    %c0_i32 = arith.constant 0 : i32
    %c0_i32_0 = arith.constant 0 : i32
    %c0_i32_1 = arith.constant 0 : i32
    return %c0_i32, %c0_i32_0 : i32, i32
  }
  func.func @transform_2(%arg0: i32) -> (i32, i32) {
    %c0_i32 = arith.constant 0 : i32
    %c0_i32_0 = arith.constant 0 : i32
    %c0_i32_1 = arith.constant 0 : i32
    return %c0_i32, %c0_i32_0 : i32, i32
  }
  func.func @transform_3(%arg0: i32) -> (i32, i32) {
    %c0_i32 = arith.constant 0 : i32
    %c0_i32_0 = arith.constant 0 : i32
    %c0_i32_1 = arith.constant 0 : i32
    return %c0_i32, %c0_i32_0 : i32, i32
  }
  func.func @transform_4(%arg0: i32) -> (i32, i32) {
    %c0_i32 = arith.constant 0 : i32
    %c0_i32_0 = arith.constant 0 : i32
    %c0_i32_1 = arith.constant 0 : i32
    return %c0_i32, %c0_i32_0 : i32, i32
  }
  func.func @transform_5(%arg0: i32) -> (i32, i32) {
    %c0_i32 = arith.constant 0 : i32
    %c0_i32_0 = arith.constant 0 : i32
    return %arg0, %c0_i32 : i32, i32
  }
}

</mosaic_0001>

<llo_original>
// kernel: _adv_forward.1
$region0: #{_adv_forward.1}
  #allocation0 [shape = 'u32[]', space=smem, size = 0x4, offset = 0x4, fixed_abs, tag = 'smem constant byte address 0x4 - core index']
  #allocation1 [shape = 'u32[144,128]{1,0:T(1,128)}', space=vmem, size = 0x12000, scoped, tag = 'internal scratch']
  %s0 = inlined_call_operand.vmem [shape: f32[8,32], index: 0, kind: input, shape index: {}]
  %s1 = inlined_call_operand.vmem [shape: bf16[32,128], index: 1, kind: input, shape index: {}]
  %s2 = inlined_call_operand.vmem [shape: f32[1,128], index: 2, kind: input, shape index: {}]
  %s3 = inlined_call_operand.vmem [shape: f32[128,2], index: 3, kind: input, shape index: {}]
  %s4 = inlined_call_operand.vmem [shape: f32[1,2], index: 4, kind: input, shape index: {}]
  %s5 = inlined_call_operand.vmem [shape: f32[8,2], index: 5, kind: output, shape index: {}]
  %s6 = sld [smem:[#allocation0]]
  $region30: #{_adv_forward.1} parent=0
    _
  %s8 = ssub.s32 1, %s6
  %s9 = scalar_select 0, %s8, %s6
  // Predicated region
  $region2: #{_adv_forward.1} parent=0 // pred_check
    _
  $region3: #{_adv_forward.1} parent=0 // pred_check_branch
    %11 = sbr.rel (0) target = $region5
  $region4: #{_adv_forward.1} parent=0 // pred_region
    _
  $region5: #{_adv_forward.1} parent=0 // pred_fallthru
    _
  // Predicated region
  $region6: #{_adv_forward.1} parent=0 // pred_check
    _
  $region7: #{_adv_forward.1} parent=0 // pred_check_branch
    %13 = sbr.rel (0) target = $region9
  $region8: #{_adv_forward.1} parent=0 // pred_region
    _
  $region9: #{_adv_forward.1} parent=0 // pred_fallthru
    _
  // Predicated region
  $region10: #{_adv_forward.1} parent=0 // pred_check
    _
  $region11: #{_adv_forward.1} parent=0 // pred_check_branch
    %15 = sbr.rel (0) target = $region13
  $region12: #{_adv_forward.1} parent=0 // pred_region
    _
  $region13: #{_adv_forward.1} parent=0 // pred_fallthru
    _
  // Predicated region
  $region14: #{_adv_forward.1} parent=0 // pred_check
    _
  $region15: #{_adv_forward.1} parent=0 // pred_check_branch
    %17 = sbr.rel (0) target = $region17
  $region16: #{_adv_forward.1} parent=0 // pred_region
    _
  $region17: #{_adv_forward.1} parent=0 // pred_fallthru
    _
  // Predicated region
  $region18: #{_adv_forward.1} parent=0 // pred_check
    _
  $region19: #{_adv_forward.1} parent=0 // pred_check_branch
    %19 = sbr.rel (0) target = $region21
  $region20: #{_adv_forward.1} parent=0 // pred_region
    _
  $region21: #{_adv_forward.1} parent=0 // pred_fallthru
    _
  %v21 = vld [vmem:[%s0] sm:$0xff]
  %v22 = vpack.c.bf16 %v21, %v21
  %v23 = vld [vmem:[%s1] sm:$0xf]
  %v24 = vld [vmem:[%s1 + $0x4] sm:$0xf]
  %v25 = vld [vmem:[%s1 + $0x8] sm:$0xf]
  %v26 = vld [vmem:[%s1 + $0xc] sm:$0xf]
  %v27 = vld [vmem:[%s2] sm:$0x1]
  %v29 = vlaneseq
  %v30 = vshrl.u32 %v29, 7
  %v31 = vsub.s32 0, %v30
  %v32 = vrot.slane %v27, %v31
  %v38 = vunpack.c.l.b16 %v23
  %v39 = vunpack.c.l.b16 %v24
  %v40 = vunpack.c.l.b16 %v25
  %v41 = vunpack.c.l.b16 %v26
  %v42 = vpack.c.b16 %v39, %v38
  %v43 = vpack.c.b16 %v41, %v40
  %vm46 = vcmask 261120
  %v48 = vsel %vm46, %v22, 0
  %50 = vmatprep.subr.bf16.mxu0 0
  %51 = vmatpush1.bf16.msra.mxu0 %v42
  %52 = vmatprep.subr.bf16.mxu0 0
  %53 = vmatpush1.bf16.msra.mxu0 %v43
  %54 = vmatprep.subr.bf16.mxu0 0
  %55 = vmatpush1.bf16.msra.mxu0 0
  %56 = vmatprep.subr.bf16.mxu0 0
  %57 = vmatpush1.bf16.msra.mxu0 0
  %58 = vmatprep.subr.bf16.mxu0 0
  %59 = vmatpush1.bf16.msra.mxu0 0
  %60 = vmatprep.subr.bf16.mxu0 0
  %61 = vmatpush1.bf16.msra.mxu0 0
  %62 = vmatprep.subr.bf16.mxu0 0
  %63 = vmatpush1.bf16.msra.mxu0 0
  %64 = vmatprep.subr.bf16.mxu0 0
  %65 = vmatpush1.bf16.msra.mxu0 0
  %66 = vmatprep.subr.bf16.mxu0 0
  %67 = vmatpush1.bf16.msra.mxu0 0
  %68 = vmatprep.subr.bf16.mxu0 0
  %69 = vmatpush1.bf16.msra.mxu0 0
  %70 = vmatprep.subr.bf16.mxu0 0
  %71 = vmatpush1.bf16.msra.mxu0 0
  %72 = vmatprep.subr.bf16.mxu0 0
  %73 = vmatpush1.bf16.msra.mxu0 0
  %74 = vmatprep.subr.bf16.mxu0 0
  %75 = vmatpush1.bf16.msra.mxu0 0
  %76 = vmatprep.subr.bf16.mxu0 0
  %77 = vmatpush1.bf16.msra.mxu0 0
  %78 = vmatprep.subr.bf16.mxu0 0
  %79 = vmatpush1.bf16.msra.mxu0 0
  %80 = vmatprep.subr.bf16.mxu0 0
  %81 = vmatpush1.bf16.msra.mxu0 0
  %82 = vmatprep.mubr.bf16.mxu0 0
  %83 = vmatmul.mubr.bf16.gmra.mrb[0].mxu0 %v48
  %v84 = vpop.f32.mrb[0].mxu0
  %v85 = vadd.f32 %v32, %v84
  %v86 = vpop.f32.mrb[0].mxu0
  %v87 = vpop.f32.mrb[0].mxu0
  %v88 = vpop.f32.mrb[0].mxu0
  %89 = vdwg.mxu0
  %v90 = vmax.f32 %v85, 0.0
  %v91 = vld [vmem:[%s3] sm:$0xff]
  %v92 = vld [vmem:[%s3 + $0x8] sm:$0xff]
  %v93 = vld [vmem:[%s3 + $0x10] sm:$0xff]
  %v94 = vld [vmem:[%s3 + $0x18] sm:$0xff]
  %v95 = vld [vmem:[%s3 + $0x20] sm:$0xff]
  %v96 = vld [vmem:[%s3 + $0x28] sm:$0xff]
  %v97 = vld [vmem:[%s3 + $0x30] sm:$0xff]
  %v98 = vld [vmem:[%s3 + $0x38] sm:$0xff]
  %v99 = vld [vmem:[%s3 + $0x40] sm:$0xff]
  %v100 = vld [vmem:[%s3 + $0x48] sm:$0xff]
  %v101 = vld [vmem:[%s3 + $0x50] sm:$0xff]
  %v102 = vld [vmem:[%s3 + $0x58] sm:$0xff]
  %v103 = vld [vmem:[%s3 + $0x60] sm:$0xff]
  %v104 = vld [vmem:[%s3 + $0x68] sm:$0xff]
  %v105 = vld [vmem:[%s3 + $0x70] sm:$0xff]
  %v106 = vld [vmem:[%s3 + $0x78] sm:$0xff]
  %v107 = vld [vmem:[%s4] sm:$0x1]
  %v109 = vlaneseq
  %v110 = vshrl.u32 %v109, 7
  %v111 = vsub.s32 0, %v110
  %v112 = vrot.slane %v107, %v111
  %114 = vmatprep.subr.mxu0 0.0
  %115 = vmatpush1.msra.mxu0 %v91
  %116 = vmatprep.subr.mxu0 0.0
  %117 = vmatpush1.msra.mxu0 %v92
  %118 = vmatprep.subr.mxu0 0.0
  %119 = vmatpush1.msra.mxu0 %v93
  %120 = vmatprep.subr.mxu0 0.0
  %121 = vmatpush1.msra.mxu0 %v94
  %122 = vmatprep.subr.mxu0 0.0
  %123 = vmatpush1.msra.mxu0 %v95
  %124 = vmatprep.subr.mxu0 0.0
  %125 = vmatpush1.msra.mxu0 %v96
  %126 = vmatprep.subr.mxu0 0.0
  %127 = vmatpush1.msra.mxu0 %v97
  %128 = vmatprep.subr.mxu0 0.0
  %129 = vmatpush1.msra.mxu0 %v98
  %130 = vmatprep.subr.mxu0 0.0
  %131 = vmatpush1.msra.mxu0 %v99
  %132 = vmatprep.subr.mxu0 0.0
  %133 = vmatpush1.msra.mxu0 %v100
  %134 = vmatprep.subr.mxu0 0.0
  %135 = vmatpush1.msra.mxu0 %v101
  %136 = vmatprep.subr.mxu0 0.0
  %137 = vmatpush1.msra.mxu0 %v102
  %138 = vmatprep.subr.mxu0 0.0
  %139 = vmatpush1.msra.mxu0 %v103
  %140 = vmatprep.subr.mxu0 0.0
  %141 = vmatpush1.msra.mxu0 %v104
  %142 = vmatprep.subr.mxu0 0.0
  %143 = vmatpush1.msra.mxu0 %v105
  %144 = vmatprep.subr.mxu0 0.0
  %145 = vmatpush1.msra.mxu0 %v106
  %146 = vmatprep.subr.mxu0 0.0
  %147 = vmatpush1.msra.mxu0 0.0
  %148 = vmatprep.subr.mxu0 0.0
  %149 = vmatpush1.msra.mxu0 0.0
  %150 = vmatprep.subr.mxu0 0.0
  %151 = vmatpush1.msra.mxu0 0.0
  %152 = vmatprep.subr.mxu0 0.0
  %153 = vmatpush1.msra.mxu0 0.0
  %154 = vmatprep.subr.mxu0 0.0
  %155 = vmatpush1.msra.mxu0 0.0
  %156 = vmatprep.subr.mxu0 0.0
  %157 = vmatpush1.msra.mxu0 0.0
  %158 = vmatprep.subr.mxu0 0.0
  %159 = vmatpush1.msra.mxu0 0.0
  %160 = vmatprep.subr.mxu0 0.0
  %161 = vmatpush1.msra.mxu0 0.0
  %162 = vmatprep.subr.mxu0 0.0
  %163 = vmatpush1.msra.mxu0 0.0
  %164 = vmatprep.subr.mxu0 0.0
  %165 = vmatpush1.msra.mxu0 0.0
  %166 = vmatprep.subr.mxu0 0.0
  %167 = vmatpush1.msra.mxu0 0.0
  %168 = vmatprep.subr.mxu0 0.0
  %169 = vmatpush1.msra.mxu0 0.0
  %170 = vmatprep.subr.mxu0 0.0
  %171 = vmatpush1.msra.mxu0 0.0
  %172 = vmatprep.subr.mxu0 0.0
  %173 = vmatpush1.msra.mxu0 0.0
  %174 = vmatprep.subr.mxu0 0.0
  %175 = vmatpush1.msra.mxu0 0.0
  %176 = vmatprep.subr.mxu0 0.0
  %177 = vmatpush1.msra.mxu0 0.0
  %178 = vmatprep.mubr.f32.mxu0 0.0
  %179 = vmatmul.mubr.f32.gmra.mrb[0].mxu0 %v90
  %v180 = vpop.f32.mrb[0].mxu0
  %v181 = vadd.f32 %v112, %v180
  %v182 = vpop.f32.mrb[0].mxu0
  %183 = vdwg.mxu0
  %vm184 = vcmask 15360
  %185 = vst.msk [vmem:[%s5] sm:$0xff] %vm184, %v181
  // Predicated region
  $region22: #{_adv_forward.1} parent=0 // pred_check
    _
  $region23: #{_adv_forward.1} parent=0 // pred_check_branch
    %187 = sbr.rel (0) target = $region25
  $region24: #{_adv_forward.1} parent=0 // pred_region
    _
  $region25: #{_adv_forward.1} parent=0 // pred_fallthru
    _
  // Predicated region
  $region26: #{_adv_forward.1} parent=0 // pred_check
    _
  $region27: #{_adv_forward.1} parent=0 // pred_check_branch
    %189 = sbr.rel (0) target = $region29
  $region28: #{_adv_forward.1} parent=0 // pred_region
    _
  $region29: #{_adv_forward.1} parent=0 // pred_fallthru
    _

</llo_original>
